<compile_context>
chip_gen: v7x
topology: tpu7x:2x2x1
jax: 0.10.0
libtpu: 0.0.40
codegen_flags: <defaults>
</compile_context>

<pallas_src>
import jax
import jax.numpy as jnp
from jax.experimental import pallas as pl
from jax.experimental.pallas import tpu as pltpu


# ---------------------------------------------------------------------------
# Hardware-aware sizing helpers
# ---------------------------------------------------------------------------
def _vmem_capacity_bytes():
    try:
        return int(pltpu.get_tpu_info().vmem_capacity_bytes)
    except Exception:
        return 64 * 1024 * 1024          # conservative fallback (v7x per-TC)


def _vmem_limit_bytes():
    # 32 MiB on v7x (64 MiB physical/TC), 64 MiB on v5e/v6e (128 MiB physical).
    return min(_vmem_capacity_bytes() // 2, 64 * 1024 * 1024)


# ---------------------------------------------------------------------------
# Kernel 1: batch-independent gate, tiled over row blocks of W.
#   prob_em = sigmoid(ones @ W^T + b) == sigmoid(W.sum(axis=1) + b)
# (all-ones LHS turns the Linear into a plain row-sum; no MXU work needed)
# ---------------------------------------------------------------------------
def rse_gate_kernel(w_ref, b_ref, gate_ref):
    w = w_ref[...].astype(jnp.float32)                    # (tr, nin)
    row_sum = jnp.sum(w, axis=1).reshape(1, -1)           # (1, tr); one-shot relayout
    gate_ref[...] = jax.nn.sigmoid(row_sum + b_ref[...])  # (1, tr)


def rse_gate(w_rse, b_rse):
    """prob_em gate, shape (1, nin), f32.  Depends only on (W, b): cache it
    across forward passes / recompute only on weight updates."""
    nin = w_rse.shape[0]
    vmem_limit = _vmem_limit_bytes()
    w_itemsize = jnp.dtype(w_rse.dtype).itemsize

    # Row tile: keep the double-buffered (tr, nin) W block well inside VMEM,
    # multiple of 128 so the (1, tr) gate block is lane-dense.
    if nin <= 128:
        tr = nin
    else:
        max_rows = max(128, (vmem_limit // 4) // (nin * w_itemsize))
        tr = min(nin, (max_rows // 128) * 128)
    grid_r = pl.cdiv(nin, tr)

    b2 = b_rse.reshape(1, nin).astype(jnp.float32)

    return pl.pallas_call(
        rse_gate_kernel,
        out_shape=jax.ShapeDtypeStruct((1, nin), jnp.float32),
        grid=(grid_r,),
        in_specs=[
            pl.BlockSpec((tr, nin), lambda i: (i, 0)),     # row block of W
            pl.BlockSpec((1, tr), lambda i: (0, i)),       # matching bias slice
        ],
        out_specs=pl.BlockSpec((1, tr), lambda i: (0, i)),
        compiler_params=pltpu.CompilerParams(
            dimension_semantics=("parallel",),
            vmem_limit_bytes=vmem_limit,
        ),
    )(w_rse, b2)


# ---------------------------------------------------------------------------
# Kernel 2: memory-bound gated blend, tiled over the batch axis.
#   out = div + (em - div) * prob_em      ( == em*p + div*(1-p) )
# ---------------------------------------------------------------------------
def rse_blend_kernel(planes_ref, gate_ref, o_ref):
    em = planes_ref[0].astype(jnp.float32)                # (TB, nin)
    dv = planes_ref[1].astype(jnp.float32)                # (TB, nin)
    g = gate_ref[...]                                     # (1, nin) f32, broadcasts
    o_ref[...] = (dv + (em - dv) * g).astype(o_ref.dtype)


def rse_apply(x, gate, *, tb=None):
    """x: (B, nin, L>=2), gate: (1, nin) f32.  Returns (B, nin) in x.dtype."""
    B, nin, _ = x.shape
    itemsize = jnp.dtype(x.dtype).itemsize
    vmem_limit = _vmem_limit_bytes()

    # Batch tile: largest tile whose double-buffered footprint
    # (~6 * tb * nin * itemsize) stays inside ~3/4 of the scoped-VMEM budget.
    if tb is None:
        budget = (vmem_limit * 3) // 4
        tb = min(4096, max(8, budget // (6 * nin * itemsize)))
    if tb >= B:
        tb = B                                    # full-extent block (always legal)
    else:
        tb = max(8, (tb // 8) * 8)                # sublane-aligned
    grid_b = pl.cdiv(B, tb)                       # ragged last block handled by Pallas

    # Lane-dense em/div slab (2, B, nin).  allow_input_fusion lets XLA fold this
    # transpose-of-slice into the pallas_call operand fetch instead of
    # materializing an extra HBM array.
    planes = jnp.transpose(x[:, :, :2], (2, 0, 1))

    out = pl.pallas_call(
        rse_blend_kernel,
        out_shape=jax.ShapeDtypeStruct((B, nin), x.dtype),
        grid=(grid_b,),
        in_specs=[
            pl.BlockSpec((2, tb, nin), lambda i: (0, i, 0)),   # em/div tile
            pl.BlockSpec((1, nin), lambda i: (0, 0)),          # gate, VMEM-resident
        ],
        out_specs=pl.BlockSpec((tb, nin), lambda i: (i, 0)),
        compiler_params=pltpu.CompilerParams(
            dimension_semantics=("parallel",),
            vmem_limit_bytes=vmem_limit,
            allow_input_fusion=[True, False],
        ),
    )(planes, gate)
    return out


def rse_forward(x, w_rse, b_rse, *, gate=None, tb=None):
    """Full forward.  Pass a precomputed `gate = rse_gate(w, b)` to avoid
    re-reading the O(nin^2) weight matrix on every call."""
    if gate is None:
        gate = rse_gate(w_rse, b_rse)
    return rse_apply(x, gate, tb=tb)


# ---------------------------------------------------------------------------
# Params / reference / demo
# ---------------------------------------------------------------------------
def init_rse_params(key, nin, reduce=16):
    """Deterministic synthetic init of all module parameters (incl. unused `se`)."""
    k = jax.random.split(key, 6)
    hid = max(nin // reduce, 1)
    # unused `se` branch params (kept for parity with __init__ shapes)
    se_w1 = jax.random.normal(k[0], (hid, nin), jnp.float32) * 0.1
    se_b1 = jax.random.normal(k[1], (hid,), jnp.float32) * 0.1
    se_w2 = jax.random.normal(k[2], (nin, hid), jnp.float32) * 0.1
    se_b2 = jax.random.normal(k[3], (nin,), jnp.float32) * 0.1
    # `rse` branch params (used in forward)
    rse_w = jax.random.normal(k[4], (nin, nin), jnp.float32) * 0.1
    rse_b = jax.random.normal(k[5], (nin,), jnp.float32) * 0.1
    return dict(se_w1=se_w1, se_b1=se_b1, se_w2=se_w2, se_b2=se_b2,
                rse_w=rse_w, rse_b=rse_b)


def rse_reference(x, w_rse, b_rse):
    em = x[:, :, 0]
    div = x[:, :, 1]
    prob_em = jax.nn.sigmoid(jnp.ones_like(em) @ w_rse.T + b_rse)
    return em * prob_em + div * (1.0 - prob_em)


if __name__ == "__main__":
    key = jax.random.PRNGKey(0)
    # Small but lane-dense demo: nin multiple of 128, B multiple of 8.
    B, nin, L = 16, 128, 2            # reduce=16 -> unused `se` hidden = 8
    kx, kp = jax.random.split(key)
    x = jax.random.normal(kx, (B, nin, L), jnp.float32)
    params = init_rse_params(kp, nin, reduce=16)

    # Gate is batch-independent: compute once and reuse across forwards.
    gate = rse_gate(params["rse_w"], params["rse_b"])
    gate = jax.block_until_ready(gate)

    out = rse_forward(x, params["rse_w"], params["rse_b"], gate=gate)
    out = jax.block_until_ready(out)

    ref = rse_reference(x, params["rse_w"], params["rse_b"])
    assert out.shape == (B, nin)
    assert jnp.allclose(out, ref, atol=1e-5, rtol=1e-5), "mismatch vs reference"

    print("KERNEL_OK")
</pallas_src>

<mosaic_0001>
module attributes {stable_mosaic.version = 11 : i64} {
  func.func @rse_gate_kernel(%arg0: i32, %arg1: memref<128x128xf32, #tpu.memory_space<vmem>>, %arg2: memref<1x128xf32, #tpu.memory_space<vmem>>, %arg3: memref<1x128xf32, #tpu.memory_space<vmem>>) attributes {dimension_semantics = [#tpu.dimension_semantics<parallel>], iteration_bounds = array<i64: 1>, scalar_prefetch = 0 : i64, scratch_operands = 0 : i64, tpu.core_type = #tpu.core_type<tc>, window_params = [{transform_indices = @transform_0, window_bounds = array<i64: 128, 128>}, {transform_indices = @transform_1, window_bounds = array<i64: 1, 128>}, {transform_indices = @transform_2, window_bounds = array<i64: 1, 128>}]} {
    %c0 = arith.constant 0 : index
    %c0_0 = arith.constant 0 : index
    %0 = vector.load %arg1[%c0, %c0_0] : memref<128x128xf32, #tpu.memory_space<vmem>>, vector<128x128xf32>
    %cst = arith.constant dense<0.000000e+00> : vector<128xf32>
    %1 = vector.multi_reduction <add>, %0, %cst [1] : vector<128x128xf32> to vector<128xf32>
    %2 = vector.shape_cast %1 : vector<128xf32> to vector<1x128xf32>
    %c0_1 = arith.constant 0 : index
    %c0_2 = arith.constant 0 : index
    %3 = vector.load %arg2[%c0_1, %c0_2] : memref<1x128xf32, #tpu.memory_space<vmem>>, vector<1x128xf32>
    %4 = arith.addf %2, %3 : vector<1x128xf32>
    %5 = arith.negf %4 : vector<1x128xf32>
    %6 = math.exp %5 : vector<1x128xf32>
    %cst_3 = arith.constant 1.000000e+00 : f32
    %7 = vector.broadcast %cst_3 : f32 to vector<1x128xf32>
    %8 = arith.addf %7, %6 : vector<1x128xf32>
    %9 = arith.divf %7, %8 : vector<1x128xf32>
    %c0_4 = arith.constant 0 : index
    %c0_5 = arith.constant 0 : index
    %10 = vector.load %arg3[%c0_4, %c0_5] : memref<1x128xf32, #tpu.memory_space<vmem>>, vector<1x128xf32>
    tpu.vector_store %arg3[%c0_4, %c0_5], %9 {strides = array<i32>} : memref<1x128xf32, #tpu.memory_space<vmem>>, vector<1x128xf32>,
    return
  }
  func.func @transform_0(%arg0: i32) -> (i32, i32) {
    %c0_i32 = arith.constant 0 : i32
    %c0_i32_0 = arith.constant 0 : i32
    return %arg0, %c0_i32 : i32, i32
  }
  func.func @transform_1(%arg0: i32) -> (i32, i32) {
    %c0_i32 = arith.constant 0 : i32
    %c0_i32_0 = arith.constant 0 : i32
    return %c0_i32, %arg0 : i32, i32
  }
  func.func @transform_2(%arg0: i32) -> (i32, i32) {
    %c0_i32 = arith.constant 0 : i32
    %c0_i32_0 = arith.constant 0 : i32
    return %c0_i32, %arg0 : i32, i32
  }
}

</mosaic_0001>

<llo_original>
// kernel: tpu_custom_call.1
$region0: #{tpu_custom_call.1}
  #allocation0 [shape = 'u32[]', space=smem, size = 0x4, offset = 0x4, fixed_abs, tag = 'smem constant byte address 0x4 - core index']
  #allocation1 [shape = 'u32[144,128]{1,0:T(1,128)}', space=vmem, size = 0x12000, scoped, tag = 'internal scratch']
  %s0 = inlined_call_operand.hbm [shape: f32[128,128], index: 0, kind: input, shape index: {}]
  %s1 = inlined_call_operand.vmem [shape: f32[1,128], index: 1, kind: input, shape index: {}]
  %s2 = inlined_call_operand.hbm [shape: f32[1,128], index: 2, kind: output, shape index: {}]
  %s3 = sld [smem:[#allocation0]]
  $region22: #{tpu_custom_call.1} parent=0
    _
  %s5 = ssub.s32 1, %s3
  %s6 = scalar_select 0, %s5, %s3
  $region1: #{tpu_custom_call.1} parent=0
    #allocation2 [shape = 'u8[65536]{0}', space=vmem, size = 0x10000, scoped, tag = 'input window, operand 0, single buffered']
    #allocation3 [shape = 's32[1]{0}', space=sflag, size = 0x4, scoped, tag = 'scoped memory for tpu_custom_call.1']
    #allocation4 [shape = 's32[1]{0}', space=sflag, size = 0x4, scoped, tag = 'scoped memory for tpu_custom_call.1']
    #allocation5 [shape = 'u8[512]{0}', space=vmem, size = 0x400, scoped, tag = 'output window, operand 0, single buffered']
    %7 = vsyncpa [#allocation3], 0
    %8 = vsyncpa [#allocation4], 0
    // Predicated region
    $region2: #{tpu_custom_call.1} parent=1 // pred_check
      _
    $region3: #{tpu_custom_call.1} parent=1 // pred_check_branch
      %10 = sbr.rel (0) target = $region5
    $region4: #{tpu_custom_call.1} parent=1 // pred_region
      %s12 = ssub.s32 2048, 2048
      %13 = vsyncadd [#allocation3], %s12
      %s14 = sshll.u32 [#allocation2], 4
      %s15 = int_to_ptr.vmem [resolvable:$true] %s14
      %20 = dma.hbm_to_vmem [thread:$0]  %s0, 2048, %s15, [#allocation3], 128, 128, 8
    $region5: #{tpu_custom_call.1} parent=1 // pred_fallthru
      _
    // Predicated region
    $region6: #{tpu_custom_call.1} parent=1 // pred_check
      _
    $region7: #{tpu_custom_call.1} parent=1 // pred_check_branch
      %22 = sbr.rel (0) target = $region9
    $region8: #{tpu_custom_call.1} parent=1 // pred_region
      _
    $region9: #{tpu_custom_call.1} parent=1 // pred_fallthru
      _
    // Predicated region
    $region10: #{tpu_custom_call.1} parent=1 // pred_check
      _
    $region11: #{tpu_custom_call.1} parent=1 // pred_check_branch
      %24 = sbr.rel (0) target = $region13
    $region12: #{tpu_custom_call.1} parent=1 // pred_region
      %25 = dma.done [#allocation3], 2048
    $region13: #{tpu_custom_call.1} parent=1 // pred_fallthru
      _
    %v26 = vld [vmem:[#allocation2] sm:$0xff]
    %v27 = vld [vmem:[#allocation2 + $0x8] sm:$0xff]
    %v28 = vld [vmem:[#allocation2 + $0x10] sm:$0xff]
    %v29 = vld [vmem:[#allocation2 + $0x18] sm:$0xff]
    %v30 = vld [vmem:[#allocation2 + $0x20] sm:$0xff]
    %v31 = vld [vmem:[#allocation2 + $0x28] sm:$0xff]
    %v32 = vld [vmem:[#allocation2 + $0x30] sm:$0xff]
    %v33 = vld [vmem:[#allocation2 + $0x38] sm:$0xff]
    %v34 = vld [vmem:[#allocation2 + $0x40] sm:$0xff]
    %v35 = vld [vmem:[#allocation2 + $0x48] sm:$0xff]
    %v36 = vld [vmem:[#allocation2 + $0x50] sm:$0xff]
    %v37 = vld [vmem:[#allocation2 + $0x58] sm:$0xff]
    %v38 = vld [vmem:[#allocation2 + $0x60] sm:$0xff]
    %v39 = vld [vmem:[#allocation2 + $0x68] sm:$0xff]
    %v40 = vld [vmem:[#allocation2 + $0x70] sm:$0xff]
    %v41 = vld [vmem:[#allocation2 + $0x78] sm:$0xff]
    %42 = vadd.xlane.f32.xlu0 %v26
    %v43 = vpop.xlane.xlu0 %42
    %44 = vadd.xlane.f32.xlu0 %v27
    %v45 = vpop.xlane.xlu0 %44
    %46 = vadd.xlane.f32.xlu0 %v28
    %v47 = vpop.xlane.xlu0 %46
    %48 = vadd.xlane.f32.xlu0 %v29
    %v49 = vpop.xlane.xlu0 %48
    %50 = vadd.xlane.f32.xlu0 %v30
    %v51 = vpop.xlane.xlu0 %50
    %52 = vadd.xlane.f32.xlu0 %v31
    %v53 = vpop.xlane.xlu0 %52
    %54 = vadd.xlane.f32.xlu0 %v32
    %v55 = vpop.xlane.xlu0 %54
    %56 = vadd.xlane.f32.xlu0 %v33
    %v57 = vpop.xlane.xlu0 %56
    %58 = vadd.xlane.f32.xlu0 %v34
    %v59 = vpop.xlane.xlu0 %58
    %60 = vadd.xlane.f32.xlu0 %v35
    %v61 = vpop.xlane.xlu0 %60
    %62 = vadd.xlane.f32.xlu0 %v36
    %v63 = vpop.xlane.xlu0 %62
    %64 = vadd.xlane.f32.xlu0 %v37
    %v65 = vpop.xlane.xlu0 %64
    %66 = vadd.xlane.f32.xlu0 %v38
    %v67 = vpop.xlane.xlu0 %66
    %68 = vadd.xlane.f32.xlu0 %v39
    %v69 = vpop.xlane.xlu0 %68
    %70 = vadd.xlane.f32.xlu0 %v40
    %v71 = vpop.xlane.xlu0 %70
    %72 = vadd.xlane.f32.xlu0 %v41
    %v73 = vpop.xlane.xlu0 %72
    %v74 = vld [vmem:[%s1] sm:$0x1]
    %v76 = vlaneseq
    %v77 = vshrl.u32 %v76, 7
    %v78 = vsub.s32 0, %v77
    %v79 = vrot.slane %v74, %v78
    %81 = vbcast.lane.b32.xlu0 %v79, 256
    %v82 = vpop.permute.xlu0 %81
    %s84 = sor.u32 256, 8
    %85 = vbcast.lane.b32.xlu0 %v79, %s84
    %v86 = vpop.permute.xlu0 %85
    %s88 = sor.u32 256, 16
    %89 = vbcast.lane.b32.xlu0 %v79, %s88
    %v90 = vpop.permute.xlu0 %89
    %s92 = sor.u32 256, 24
    %93 = vbcast.lane.b32.xlu0 %v79, %s92
    %v94 = vpop.permute.xlu0 %93
    %s96 = sor.u32 256, 32
    %97 = vbcast.lane.b32.xlu0 %v79, %s96
    %v98 = vpop.permute.xlu0 %97
    %s100 = sor.u32 256, 40
    %101 = vbcast.lane.b32.xlu0 %v79, %s100
    %v102 = vpop.permute.xlu0 %101
    %s104 = sor.u32 256, 48
    %105 = vbcast.lane.b32.xlu0 %v79, %s104
    %v106 = vpop.permute.xlu0 %105
    %s108 = sor.u32 256, 56
    %109 = vbcast.lane.b32.xlu0 %v79, %s108
    %v110 = vpop.permute.xlu0 %109
    %s112 = sor.u32 256, 64
    %113 = vbcast.lane.b32.xlu0 %v79, %s112
    %v114 = vpop.permute.xlu0 %113
    %s116 = sor.u32 256, 72
    %117 = vbcast.lane.b32.xlu0 %v79, %s116
    %v118 = vpop.permute.xlu0 %117
    %s120 = sor.u32 256, 80
    %121 = vbcast.lane.b32.xlu0 %v79, %s120
    %v122 = vpop.permute.xlu0 %121
    %s124 = sor.u32 256, 88
    %125 = vbcast.lane.b32.xlu0 %v79, %s124
    %v126 = vpop.permute.xlu0 %125
    %s128 = sor.u32 256, 96
    %129 = vbcast.lane.b32.xlu0 %v79, %s128
    %v130 = vpop.permute.xlu0 %129
    %s132 = sor.u32 256, 104
    %133 = vbcast.lane.b32.xlu0 %v79, %s132
    %v134 = vpop.permute.xlu0 %133
    %s136 = sor.u32 256, 112
    %137 = vbcast.lane.b32.xlu0 %v79, %s136
    %v138 = vpop.permute.xlu0 %137
    %s140 = sor.u32 256, 120
    %141 = vbcast.lane.b32.xlu0 %v79, %s140
    %v142 = vpop.permute.xlu0 %141
    %v159 = vadd.f32 %v43, %v82
    %v160 = vadd.f32 %v45, %v86
    %v161 = vadd.f32 %v47, %v90
    %v162 = vadd.f32 %v49, %v94
    %v163 = vadd.f32 %v51, %v98
    %v164 = vadd.f32 %v53, %v102
    %v165 = vadd.f32 %v55, %v106
    %v166 = vadd.f32 %v57, %v110
    %v167 = vadd.f32 %v59, %v114
    %v168 = vadd.f32 %v61, %v118
    %v169 = vadd.f32 %v63, %v122
    %v170 = vadd.f32 %v65, %v126
    %v171 = vadd.f32 %v67, %v130
    %v172 = vadd.f32 %v69, %v134
    %v173 = vadd.f32 %v71, %v138
    %v174 = vadd.f32 %v73, %v142
    %v175 = vxor.u32 %v159, 2147483648
    %v176 = vxor.u32 %v160, 2147483648
    %v177 = vxor.u32 %v161, 2147483648
    %v178 = vxor.u32 %v162, 2147483648
    %v179 = vxor.u32 %v163, 2147483648
    %v180 = vxor.u32 %v164, 2147483648
    %v181 = vxor.u32 %v165, 2147483648
    %v182 = vxor.u32 %v166, 2147483648
    %v183 = vxor.u32 %v167, 2147483648
    %v184 = vxor.u32 %v168, 2147483648
    %v185 = vxor.u32 %v169, 2147483648
    %v186 = vxor.u32 %v170, 2147483648
    %v187 = vxor.u32 %v171, 2147483648
    %v188 = vxor.u32 %v172, 2147483648
    %v189 = vxor.u32 %v173, 2147483648
    %v190 = vxor.u32 %v174, 2147483648
    %v191 = vmul.f32 %v175, 1.442695
    %v192 = vpow.pop %v191
    %v193 = vmul.f32 %v176, 1.442695
    %v194 = vpow.pop %v193
    %v195 = vmul.f32 %v177, 1.442695
    %v196 = vpow.pop %v195
    %v197 = vmul.f32 %v178, 1.442695
    %v198 = vpow.pop %v197
    %v199 = vmul.f32 %v179, 1.442695
    %v200 = vpow.pop %v199
    %v201 = vmul.f32 %v180, 1.442695
    %v202 = vpow.pop %v201
    %v203 = vmul.f32 %v181, 1.442695
    %v204 = vpow.pop %v203
    %v205 = vmul.f32 %v182, 1.442695
    %v206 = vpow.pop %v205
    %v207 = vmul.f32 %v183, 1.442695
    %v208 = vpow.pop %v207
    %v209 = vmul.f32 %v184, 1.442695
    %v210 = vpow.pop %v209
    %v211 = vmul.f32 %v185, 1.442695
    %v212 = vpow.pop %v211
    %v213 = vmul.f32 %v186, 1.442695
    %v214 = vpow.pop %v213
    %v215 = vmul.f32 %v187, 1.442695
    %v216 = vpow.pop %v215
    %v217 = vmul.f32 %v188, 1.442695
    %v218 = vpow.pop %v217
    %v219 = vmul.f32 %v189, 1.442695
    %v220 = vpow.pop %v219
    %v221 = vmul.f32 %v190, 1.442695
    %v222 = vpow.pop %v221
    %v223 = vadd.f32 %v192, 1.0
    %v224 = vadd.f32 %v194, 1.0
    %v225 = vadd.f32 %v196, 1.0
    %v226 = vadd.f32 %v198, 1.0
    %v227 = vadd.f32 %v200, 1.0
    %v228 = vadd.f32 %v202, 1.0
    %v229 = vadd.f32 %v204, 1.0
    %v230 = vadd.f32 %v206, 1.0
    %v231 = vadd.f32 %v208, 1.0
    %v232 = vadd.f32 %v210, 1.0
    %v233 = vadd.f32 %v212, 1.0
    %v234 = vadd.f32 %v214, 1.0
    %v235 = vadd.f32 %v216, 1.0
    %v236 = vadd.f32 %v218, 1.0
    %v237 = vadd.f32 %v220, 1.0
    %v238 = vadd.f32 %v222, 1.0
    %v239 = vrcp.pop %v223
    %v240 = vmul.f32 1.0, %v239
    %v241 = vrcp.pop %v224
    %v242 = vmul.f32 1.0, %v241
    %v243 = vrcp.pop %v225
    %v244 = vmul.f32 1.0, %v243
    %v245 = vrcp.pop %v226
    %v246 = vmul.f32 1.0, %v245
    %v247 = vrcp.pop %v227
    %v248 = vmul.f32 1.0, %v247
    %v249 = vrcp.pop %v228
    %v250 = vmul.f32 1.0, %v249
    %v251 = vrcp.pop %v229
    %v252 = vmul.f32 1.0, %v251
    %v253 = vrcp.pop %v230
    %v254 = vmul.f32 1.0, %v253
    %v255 = vrcp.pop %v231
    %v256 = vmul.f32 1.0, %v255
    %v257 = vrcp.pop %v232
    %v258 = vmul.f32 1.0, %v257
    %v259 = vrcp.pop %v233
    %v260 = vmul.f32 1.0, %v259
    %v261 = vrcp.pop %v234
    %v262 = vmul.f32 1.0, %v261
    %v263 = vrcp.pop %v235
    %v264 = vmul.f32 1.0, %v263
    %v265 = vrcp.pop %v236
    %v266 = vmul.f32 1.0, %v265
    %v267 = vrcp.pop %v237
    %v268 = vmul.f32 1.0, %v267
    %v269 = vrcp.pop %v238
    %v270 = vmul.f32 1.0, %v269
    %287 = vset.pattern.permute.xlu0 0
    %288 = vperm.xlu0 %287, %v240
    %v289 = vpop.permute.xlu0 %288
    %290 = vset.pattern.permute.xlu0 0
    %291 = vperm.xlu0 %290, %v242
    %v292 = vpop.permute.xlu0 %291
    %293 = vset.pattern.permute.xlu0 0
    %294 = vperm.xlu0 %293, %v244
    %v295 = vpop.permute.xlu0 %294
    %296 = vset.pattern.permute.xlu0 0
    %297 = vperm.xlu0 %296, %v246
    %v298 = vpop.permute.xlu0 %297
    %299 = vset.pattern.permute.xlu0 0
    %300 = vperm.xlu0 %299, %v248
    %v301 = vpop.permute.xlu0 %300
    %302 = vset.pattern.permute.xlu0 0
    %303 = vperm.xlu0 %302, %v250
    %v304 = vpop.permute.xlu0 %303
    %305 = vset.pattern.permute.xlu0 0
    %306 = vperm.xlu0 %305, %v252
    %v307 = vpop.permute.xlu0 %306
    %308 = vset.pattern.permute.xlu0 0
    %309 = vperm.xlu0 %308, %v254
    %v310 = vpop.permute.xlu0 %309
    %311 = vset.pattern.permute.xlu0 0
    %312 = vperm.xlu0 %311, %v256
    %v313 = vpop.permute.xlu0 %312
    %314 = vset.pattern.permute.xlu0 0
    %315 = vperm.xlu0 %314, %v258
    %v316 = vpop.permute.xlu0 %315
    %317 = vset.pattern.permute.xlu0 0
    %318 = vperm.xlu0 %317, %v260
    %v319 = vpop.permute.xlu0 %318
    %320 = vset.pattern.permute.xlu0 0
    %321 = vperm.xlu0 %320, %v262
    %v322 = vpop.permute.xlu0 %321
    %323 = vset.pattern.permute.xlu0 0
    %324 = vperm.xlu0 %323, %v264
    %v325 = vpop.permute.xlu0 %324
    %326 = vset.pattern.permute.xlu0 0
    %327 = vperm.xlu0 %326, %v266
    %v328 = vpop.permute.xlu0 %327
    %329 = vset.pattern.permute.xlu0 0
    %330 = vperm.xlu0 %329, %v268
    %v331 = vpop.permute.xlu0 %330
    %332 = vset.pattern.permute.xlu0 0
    %333 = vperm.xlu0 %332, %v270
    %v334 = vpop.permute.xlu0 %333
    %v335 = vlaneseq
    %v336 = vand.u32 %v335, 127
    %v337 = vlaneseq
    %v338 = vshrl.u32 %v337, 7
    %v339 = vsub.s32 %v336, %v338
    %v340 = vrot.slane %v289, %v339
    %v341 = vadd.s32 %v336, 4294967288
    %v342 = vlaneseq
    %v343 = vshrl.u32 %v342, 7
    %v344 = vsub.s32 %v341, %v343
    %v345 = vrot.slane %v292, %v344
    %vm346 = vcmask 130112
    %v347 = vsel %vm346, %v345, %v340
    %v348 = vadd.s32 %v336, 4294967280
    %v349 = vlaneseq
    %v350 = vshrl.u32 %v349, 7
    %v351 = vsub.s32 %v348, %v350
    %v352 = vrot.slane %v295, %v351
    %vm353 = vcmask 195712
    %v354 = vsel %vm353, %v352, %v347
    %v355 = vadd.s32 %v336, 4294967272
    %v356 = vlaneseq
    %v357 = vshrl.u32 %v356, 7
    %v358 = vsub.s32 %v355, %v357
    %v359 = vrot.slane %v298, %v358
    %vm360 = vcmask 261312
    %v361 = vsel %vm360, %v359, %v354
    %v362 = vadd.s32 %v336, 4294967264
    %v363 = vlaneseq
    %v364 = vshrl.u32 %v363, 7
    %v365 = vsub.s32 %v362, %v364
    %v366 = vrot.slane %v301, %v365
    %vm367 = vcmask 326912
    %v368 = vsel %vm367, %v366, %v361
    %v369 = vadd.s32 %v336, 4294967256
    %v370 = vlaneseq
    %v371 = vshrl.u32 %v370, 7
    %v372 = vsub.s32 %v369, %v371
    %v373 = vrot.slane %v304, %v372
    %vm374 = vcmask 392512
    %v375 = vsel %vm374, %v373, %v368
    %v376 = vadd.s32 %v336, 4294967248
    %v377 = vlaneseq
    %v378 = vshrl.u32 %v377, 7
    %v379 = vsub.s32 %v376, %v378
    %v380 = vrot.slane %v307, %v379
    %vm381 = vcmask 458112
    %v382 = vsel %vm381, %v380, %v375
    %v383 = vadd.s32 %v336, 4294967240
    %v384 = vlaneseq
    %v385 = vshrl.u32 %v384, 7
    %v386 = vsub.s32 %v383, %v385
    %v387 = vrot.slane %v310, %v386
    %vm388 = vcmask 523712
    %v389 = vsel %vm388, %v387, %v382
    %v390 = vadd.s32 %v336, 4294967232
    %v391 = vlaneseq
    %v392 = vshrl.u32 %v391, 7
    %v393 = vsub.s32 %v390, %v392
    %v394 = vrot.slane %v313, %v393
    %vm395 = vcmask 589312
    %v396 = vsel %vm395, %v394, %v389
    %v397 = vadd.s32 %v336, 4294967224
    %v398 = vlaneseq
    %v399 = vshrl.u32 %v398, 7
    %v400 = vsub.s32 %v397, %v399
    %v401 = vrot.slane %v316, %v400
    %vm402 = vcmask 654912
    %v403 = vsel %vm402, %v401, %v396
    %v404 = vadd.s32 %v336, 4294967216
    %v405 = vlaneseq
    %v406 = vshrl.u32 %v405, 7
    %v407 = vsub.s32 %v404, %v406
    %v408 = vrot.slane %v319, %v407
    %vm409 = vcmask 720512
    %v410 = vsel %vm409, %v408, %v403
    %v411 = vadd.s32 %v336, 4294967208
    %v412 = vlaneseq
    %v413 = vshrl.u32 %v412, 7
    %v414 = vsub.s32 %v411, %v413
    %v415 = vrot.slane %v322, %v414
    %vm416 = vcmask 786112
    %v417 = vsel %vm416, %v415, %v410
    %v418 = vadd.s32 %v336, 4294967200
    %v419 = vlaneseq
    %v420 = vshrl.u32 %v419, 7
    %v421 = vsub.s32 %v418, %v420
    %v422 = vrot.slane %v325, %v421
    %vm423 = vcmask 851712
    %v424 = vsel %vm423, %v422, %v417
    %v425 = vadd.s32 %v336, 4294967192
    %v426 = vlaneseq
    %v427 = vshrl.u32 %v426, 7
    %v428 = vsub.s32 %v425, %v427
    %v429 = vrot.slane %v328, %v428
    %vm430 = vcmask 917312
    %v431 = vsel %vm430, %v429, %v424
    %v432 = vadd.s32 %v336, 4294967184
    %v433 = vlaneseq
    %v434 = vshrl.u32 %v433, 7
    %v435 = vsub.s32 %v432, %v434
    %v436 = vrot.slane %v331, %v435
    %vm437 = vcmask 982912
    %v438 = vsel %vm437, %v436, %v431
    %v439 = vadd.s32 %v336, 4294967176
    %v440 = vlaneseq
    %v441 = vshrl.u32 %v440, 7
    %v442 = vsub.s32 %v439, %v441
    %v443 = vrot.slane %v334, %v442
    %vm444 = vcmask 1048512
    %v445 = vsel %vm444, %v443, %v438
    %447 = vst [vmem:[#allocation5] sm:$0x1] %v445
    // Predicated region
    $region14: #{tpu_custom_call.1} parent=1 // pred_check
      _
    $region15: #{tpu_custom_call.1} parent=1 // pred_check_branch
      %449 = sbr.rel (0) target = $region17
    $region16: #{tpu_custom_call.1} parent=1 // pred_region
      %s451 = ssub.s32 16, 16
      %452 = vsyncadd [#allocation4], %s451
      %s454 = sshll.u32 [#allocation5], 4
      %s455 = int_to_ptr.vmem [resolvable:$true] %s454
      %457 = dma.vmem_to_hbm [thread:$0]  %s455, 16, %s2, [#allocation4]
    $region17: #{tpu_custom_call.1} parent=1 // pred_fallthru
      _
    // Predicated region
    $region18: #{tpu_custom_call.1} parent=1 // pred_check
      _
    $region19: #{tpu_custom_call.1} parent=1 // pred_check_branch
      %459 = sbr.rel (0) target = $region21
    $region20: #{tpu_custom_call.1} parent=1 // pred_region
      %460 = dma.done [#allocation4], 16
    $region21: #{tpu_custom_call.1} parent=1 // pred_fallthru
      _
    %461 = vsyncpa [#allocation3], 1
    %462 = vsyncpa [#allocation4], 1

</llo_original>
